<compile_context>
chip_gen: v5e
topology: v5e:2x2
jax: 0.10.0
libtpu: 0.0.40
codegen_flags: <defaults>
</compile_context>

<pallas_src>
import functools

import jax
import jax.numpy as jnp
from jax.experimental import pallas as pl
from jax.experimental.pallas import tpu as pltpu


def fused_mlp_logsoftmax_kernel(x_ref, w_ref, b_ref, o_ref):
    # Single fused Linear: [TB, in] @ [in, out] + [1, out], f32 accumulation.
    logits = jnp.dot(x_ref[...], w_ref[...],
                     preferred_element_type=jnp.float32) + b_ref[...]
    # LogSoftmax(dim=1), numerically stabilized. max/sum -> XLU, exp/log -> EUP.
    m = jnp.max(logits, axis=-1, keepdims=True)
    shifted = logits - m
    lse = jnp.log(jnp.sum(jnp.exp(shifted), axis=-1, keepdims=True))
    o_ref[...] = shifted - lse


def _round_up(x, m):
    return ((x + m - 1) // m) * m


@functools.partial(jax.jit, static_argnames=("tile_batch", "use_bf16"))
def model_forward(x, params, *, tile_batch=8192, use_bf16=False):
    """x: [batch, input_size] f32.  params: dict of (W:[in,out], b:[1,out]).

    tile_batch: cap on batch rows per grid step (8192 -> ~10 MiB live VMEM,
    within default scoped VMEM on v5e/v6e/v7x).
    use_bf16: cast x / fused W to bf16 for the matmul (v6e/v7x); accumulation
    and log-softmax remain f32.  Loosens accuracy vs the f32 reference.
    """
    # --- trace-time exact layer fusion (Dropout(p=1/128) = identity in eval) ---
    # TODO(synk): training-mode Dropout / backward pass are not covered by this
    # fused-inference formulation.
    w = params["w1"] @ params["w2"] @ params["w3"] @ params["w4"]          # [in, out]
    b = ((params["b1"] @ params["w2"] + params["b2"])
         @ params["w3"] + params["b3"]) @ params["w4"] + params["b4"]      # [1, out]

    batch, in_size = x.shape
    out_size = w.shape[1]

    if use_bf16:
        x = x.astype(jnp.bfloat16)
        w = w.astype(jnp.bfloat16)
    # bias stays f32: added to the f32 MXU accumulator.

    # Batch tile: multiple of 8 (sublane), capped at tile_batch, and sized so
    # any batch > 8 yields >= 2 grid steps (lets "parallel" shard across the
    # two v7x TensorCores; no effect on single-TC v5e/v6e).
    tb = min(tile_batch, max(8, _round_up(pl.cdiv(batch, 2), 8)))
    grid = (pl.cdiv(batch, tb),)   # ragged last block: output writes masked

    itemsize = jnp.dtype(x.dtype).itemsize
    cost = pl.CostEstimate(
        flops=2 * batch * in_size * out_size,
        transcendentals=batch * out_size,            # exp + log per logit
        bytes_accessed=(batch * in_size * itemsize   # x read
                        + in_size * out_size * itemsize  # fused W
                        + out_size * 4                   # fused b
                        + batch * out_size * 4),         # output write
    )

    out = pl.pallas_call(
        fused_mlp_logsoftmax_kernel,
        out_shape=jax.ShapeDtypeStruct((batch, out_size), jnp.float32),
        grid=grid,
        in_specs=[
            # x: tiled along batch (last block may be partial; reads padded)
            pl.BlockSpec((tb, in_size), lambda i: (i, 0)),
            # fused weight / bias: VMEM-resident across all grid steps
            pl.BlockSpec((in_size, out_size), lambda i: (0, 0)),
            pl.BlockSpec((1, out_size), lambda i: (0, 0)),
        ],
        out_specs=pl.BlockSpec((tb, out_size), lambda i: (i, 0)),
        compiler_params=pltpu.CompilerParams(
            dimension_semantics=("parallel",),
        ),
        cost_estimate=cost,
    )(x, w, b)

    return out


def init_params(key, input_size, output_size):
    """Deterministic init mimicking PyTorch Linear default U(-1/sqrt(in), 1/sqrt(in))."""
    dims = [(input_size, 128), (128, 64), (64, 8), (8, output_size)]
    params = {}
    keys = jax.random.split(key, 2 * len(dims))
    for i, (fan_in, fan_out) in enumerate(dims):
        bound = 1.0 / jnp.sqrt(jnp.float32(fan_in))
        w = jax.random.uniform(keys[2 * i], (fan_in, fan_out),
                               dtype=jnp.float32, minval=-bound, maxval=bound)
        bb = jax.random.uniform(keys[2 * i + 1], (1, fan_out),
                                dtype=jnp.float32, minval=-bound, maxval=bound)
        params[f"w{i + 1}"] = w
        params[f"b{i + 1}"] = bb
    return params


def reference_forward(x, p):
    # Layer-by-layer reference matching the PyTorch module (Dropout = identity).
    h = x @ p["w1"] + p["b1"]
    h = h @ p["w2"] + p["b2"]
    h = h @ p["w3"] + p["b3"]
    logits = h @ p["w4"] + p["b4"]
    return jax.nn.log_softmax(logits, axis=1)


if __name__ == "__main__":
    input_size = 32
    output_size = 10

    key = jax.random.PRNGKey(0)
    kx, kp, kx2 = jax.random.split(key, 3)
    params = init_params(kp, input_size, output_size)

    # --- small primary test (single grid step) ---
    batch = 8
    x = jax.random.normal(kx, (batch, input_size), dtype=jnp.float32)
    out = jax.block_until_ready(model_forward(x, params))
    ref = reference_forward(x, params)
    assert out.shape == (batch, output_size)
    assert jnp.allclose(out, ref, atol=1e-5, rtol=1e-5)
    assert jnp.allclose(jnp.sum(jnp.exp(out), axis=1), 1.0, atol=1e-5)

    # --- secondary test: multi-step grid + ragged (masked) last block, no padding pass ---
    batch2 = 100
    x2 = jax.random.normal(kx2, (batch2, input_size), dtype=jnp.float32)
    out2 = jax.block_until_ready(model_forward(x2, params, tile_batch=64))
    ref2 = reference_forward(x2, params)
    assert out2.shape == (batch2, output_size)
    assert jnp.allclose(out2, ref2, atol=1e-5, rtol=1e-5)
    assert jnp.allclose(jnp.sum(jnp.exp(out2), axis=1), 1.0, atol=1e-5)

    print("KERNEL_OK")
</pallas_src>

<mosaic_0001>
module attributes {stable_mosaic.version = 11 : i64} {
  func.func @fused_mlp_logsoftmax_kernel(%arg0: i32, %arg1: memref<8x32xf32, #tpu.memory_space<vmem>>, %arg2: memref<32x10xf32, #tpu.memory_space<vmem>>, %arg3: memref<1x10xf32, #tpu.memory_space<vmem>>, %arg4: memref<8x10xf32, #tpu.memory_space<vmem>>) attributes {dimension_semantics = [#tpu.dimension_semantics<parallel>], iteration_bounds = array<i64: 1>, scalar_prefetch = 0 : i64, scratch_operands = 0 : i64, tpu.core_type = #tpu.core_type<tc>, window_params = [{transform_indices = @transform_0, window_bounds = array<i64: 8, 32>}, {pipeline_mode = #tpu.pipeline_mode<synchronous>, transform_indices = @transform_1, window_bounds = array<i64: 32, 10>}, {pipeline_mode = #tpu.pipeline_mode<synchronous>, transform_indices = @transform_2, window_bounds = array<i64: 1, 10>}, {transform_indices = @transform_3, window_bounds = array<i64: 8, 10>}]} {
    %c0 = arith.constant 0 : index
    %c0_0 = arith.constant 0 : index
    %0 = vector.load %arg1[%c0, %c0_0] : memref<8x32xf32, #tpu.memory_space<vmem>>, vector<8x32xf32>
    %c0_1 = arith.constant 0 : index
    %c0_2 = arith.constant 0 : index
    %1 = vector.load %arg2[%c0_1, %c0_2] : memref<32x10xf32, #tpu.memory_space<vmem>>, vector<32x10xf32>
    %cst = arith.constant dense<0.000000e+00> : vector<8x10xf32>
    %2 = tpu.matmul %0, %1, %cst {dimension_numbers = #tpu.dot_dimension_numbers<[1], [0], [0], [1], [0, 0, 1, 1], [], []>} : vector<8x32xf32>, vector<32x10xf32>, vector<8x10xf32> -> vector<8x10xf32>
    %c0_3 = arith.constant 0 : index
    %c0_4 = arith.constant 0 : index
    %3 = vector.load %arg3[%c0_3, %c0_4] : memref<1x10xf32, #tpu.memory_space<vmem>>, vector<1x10xf32>
    %4 = vector.broadcast %3 : vector<1x10xf32> to vector<8x10xf32>
    %5 = arith.addf %2, %4 : vector<8x10xf32>
    %cst_5 = arith.constant dense<0xFF800000> : vector<8xf32>
    %6 = vector.multi_reduction <maximumf>, %5, %cst_5 [1] : vector<8x10xf32> to vector<8xf32>
    %7 = vector.shape_cast %6 : vector<8xf32> to vector<8x1xf32>
    %8 = vector.broadcast %7 : vector<8x1xf32> to vector<8x10xf32>
    %9 = arith.subf %5, %8 : vector<8x10xf32>
    %10 = math.exp %9 : vector<8x10xf32>
    %cst_6 = arith.constant dense<0.000000e+00> : vector<8xf32>
    %11 = vector.multi_reduction <add>, %10, %cst_6 [1] : vector<8x10xf32> to vector<8xf32>
    %12 = vector.shape_cast %11 : vector<8xf32> to vector<8x1xf32>
    %13 = math.log %12 : vector<8x1xf32>
    %14 = vector.broadcast %13 : vector<8x1xf32> to vector<8x10xf32>
    %15 = arith.subf %9, %14 : vector<8x10xf32>
    %c0_7 = arith.constant 0 : index
    %c0_8 = arith.constant 0 : index
    %16 = vector.load %arg4[%c0_7, %c0_8] : memref<8x10xf32, #tpu.memory_space<vmem>>, vector<8x10xf32>
    tpu.vector_store %arg4[%c0_7, %c0_8], %15 {strides = array<i32>} : memref<8x10xf32, #tpu.memory_space<vmem>>, vector<8x10xf32>,
    return
  }
  func.func @transform_0(%arg0: i32) -> (i32, i32) {
    %c0_i32 = arith.constant 0 : i32
    %c0_i32_0 = arith.constant 0 : i32
    return %arg0, %c0_i32 : i32, i32
  }
  func.func @transform_1(%arg0: i32) -> (i32, i32) {
    %c0_i32 = arith.constant 0 : i32
    %c0_i32_0 = arith.constant 0 : i32
    %c0_i32_1 = arith.constant 0 : i32
    return %c0_i32, %c0_i32_0 : i32, i32
  }
  func.func @transform_2(%arg0: i32) -> (i32, i32) {
    %c0_i32 = arith.constant 0 : i32
    %c0_i32_0 = arith.constant 0 : i32
    %c0_i32_1 = arith.constant 0 : i32
    return %c0_i32, %c0_i32_0 : i32, i32
  }
  func.func @transform_3(%arg0: i32) -> (i32, i32) {
    %c0_i32 = arith.constant 0 : i32
    %c0_i32_0 = arith.constant 0 : i32
    return %arg0, %c0_i32 : i32, i32
  }
}

</mosaic_0001>

<llo_original>
// kernel: model_forward.1
$region0: #{model_forward.1}
  #allocation0 [shape = 'u32[]', space=smem, size = 0x4, offset = 0x4, fixed_abs, tag = 'smem constant byte address 0x4 - core index']
  #allocation1 [shape = 'u32[72,128]{1,0:T(1,128)}', space=vmem, size = 0x9000, scoped, tag = 'internal scratch']
  %s0 = inlined_call_operand.vmem [shape: f32[8,32], index: 0, kind: input, shape index: {}]
  %s1 = inlined_call_operand.vmem [shape: f32[32,10], index: 1, kind: input, shape index: {}]
  %s2 = inlined_call_operand.vmem [shape: f32[1,10], index: 2, kind: input, shape index: {}]
  %s3 = inlined_call_operand.hbm [shape: f32[8,10], index: 3, kind: output, shape index: {}]
  %s4 = sld [smem:[#allocation0]]
  $region22: #{model_forward.1} parent=0
    _
  %s6 = ssub.s32 1, %s4
  %s7 = scalar_select 0, %s6, %s4
  $region1: #{model_forward.1} parent=0
    #allocation2 [shape = 'u8[4096]{0}', space=vmem, size = 0x1000, scoped, tag = 'output window, operand 0, single buffered']
    #allocation3 [shape = 's32[1]{0}', space=sflag, size = 0x4, scoped, tag = 'scoped memory for model_forward.1']
    %8 = vsyncpa [#allocation3], 0
    // Predicated region
    $region2: #{model_forward.1} parent=1 // pred_check
      _
    $region3: #{model_forward.1} parent=1 // pred_check_branch
      %10 = sbr.rel (0) target = $region5
    $region4: #{model_forward.1} parent=1 // pred_region
      _
    $region5: #{model_forward.1} parent=1 // pred_fallthru
      _
    // Predicated region
    $region6: #{model_forward.1} parent=1 // pred_check
      _
    $region7: #{model_forward.1} parent=1 // pred_check_branch
      %12 = sbr.rel (0) target = $region9
    $region8: #{model_forward.1} parent=1 // pred_region
      _
    $region9: #{model_forward.1} parent=1 // pred_fallthru
      _
    // Predicated region
    $region10: #{model_forward.1} parent=1 // pred_check
      _
    $region11: #{model_forward.1} parent=1 // pred_check_branch
      %14 = sbr.rel (0) target = $region13
    $region12: #{model_forward.1} parent=1 // pred_region
      _
    $region13: #{model_forward.1} parent=1 // pred_fallthru
      _
    %v15 = vld [vmem:[%s0] sm:$0xff]
    %v16 = vld [vmem:[%s1] sm:$0xff]
    %v17 = vld [vmem:[%s1 + $0x8] sm:$0xff]
    %v18 = vld [vmem:[%s1 + $0x10] sm:$0xff]
    %v19 = vld [vmem:[%s1 + $0x18] sm:$0xff]
    %v20 = vld [vmem:[%s2] sm:$0x1]
    %v22 = vperm.slane %v20, 0
    %vm24 = vcmask 261120
    %v26 = vsel %vm24, %v15, 0
    %28 = vmatpush.msra.mxu0 0.0
    %29 = vmatpush.msra.mxu0 0.0
    %30 = vmatpush.msra.mxu0 0.0
    %31 = vmatpush.msra.mxu0 0.0
    %32 = vmatpush.msra.mxu0 0.0
    %33 = vmatpush.msra.mxu0 0.0
    %34 = vmatpush.msra.mxu0 0.0
    %35 = vmatpush.msra.mxu0 0.0
    %36 = vmatpush.msra.mxu0 0.0
    %37 = vmatpush.msra.mxu0 0.0
    %38 = vmatpush.msra.mxu0 0.0
    %39 = vmatpush.msra.mxu0 0.0
    %40 = vmatpush.msra.mxu0 %v19
    %41 = vmatpush.msra.mxu0 %v18
    %42 = vmatpush.msra.mxu0 %v17
    %43 = vmatpush.msra.mxu0 %v16
    %44 = vmatmul.f32.gmra.mxu0 %v26
    %v45 = vpop.f32.mrf.mxu0
    %v46 = vadd.f32 %v22, %v45
    %47 = vdwg.mxu0
    %vm48 = vcmask 80896
    %v49 = vsel %vm48, %v46, -inf
    %50 = vmax.xlane.f32.xlu0 %v49
    %v51 = vpop.xlane.xlu0 %50
    %v52 = vsub.f32 %v46, %v51
    %v53 = vmul.f32 %v52, 1.442695
    %v54 = vpow.pop %v53
    %v55 = vsel %vm48, %v54, 0.0
    %56 = vadd.xlane.f32.xlu0 %v55
    %v57 = vpop.xlane.xlu0 %56
    %v58 = vlog2.pop %v57
    %v59 = vmul.f32 %v58, 0.6931472
    %v60 = vsub.f32 %v52, %v59
    %61 = vst.msk [vmem:[#allocation2] sm:$0xff] %vm48, %v60
    // Predicated region
    $region14: #{model_forward.1} parent=1 // pred_check
      _
    $region15: #{model_forward.1} parent=1 // pred_check_branch
      %63 = sbr.rel (0) target = $region17
    $region16: #{model_forward.1} parent=1 // pred_region
      %65 = vsyncadd [#allocation3], 0
      %s67 = sshll.u32 [#allocation2], 4
      %s68 = int_to_ptr.vmem [resolvable:$true] %s67
      %s69 = sshll.u32 %s3, 4
      %s70 = int_to_ptr.hbm [resolvable:$true] %s69
      %72 = dma.vmem_to_hbm [thread:$0]  %s68, 128, %s70, [#allocation3]
    $region17: #{model_forward.1} parent=1 // pred_fallthru
      _
    // Predicated region
    $region18: #{model_forward.1} parent=1 // pred_check
      _
    $region19: #{model_forward.1} parent=1 // pred_check_branch
      %74 = sbr.rel (0) target = $region21
    $region20: #{model_forward.1} parent=1 // pred_region
      %76 = dma.done [#allocation3], 128
    $region21: #{model_forward.1} parent=1 // pred_fallthru
      _
    %77 = vsyncpa [#allocation3], 1

</llo_original>
